<compile_context>
chip_gen: v7x
topology: tpu7x:2x2x1
jax: 0.10.0
libtpu: 0.0.40
codegen_flags: <defaults>
</compile_context>

<pallas_src>
import jax
import jax.numpy as jnp
from jax.experimental import pallas as pl
from jax.experimental.pallas import tpu as pltpu

EPS = 1e-6


def _layernorm_kernel(x_ref, center_ref, o_ref):
    x = x_ref[...].astype(jnp.float32)                      # (tile_rows, F)
    n = x.shape[-1]

    # One-pass moments: two independent lane (XLU) reductions instead of the
    # serial mean -> diff -> sum(diff^2) chain.
    s1 = jnp.sum(x, axis=-1, keepdims=True)                 # (tile_rows, 1)
    s2 = jnp.sum(x * x, axis=-1, keepdims=True)             # (tile_rows, 1)
    mean = s1 * (1.0 / n)
    # Bessel's correction (torch.std default divides by N-1).
    var = (s2 - n * mean * mean) * (1.0 / (n - 1))
    var = jnp.maximum(var, 0.0)                             # guard cancellation
    std = jnp.sqrt(var)

    # torch module adds eps to std (not var). Reciprocal on a (tile_rows, 1)
    # column + full-width multiply instead of a full-width divide.
    inv = pl.reciprocal(std + EPS, approx=False)            # exact: keeps 1e-5 tol
    out = (x - mean) * inv
    # center=True: add center_param (broadcast over rows). scale=False: no multiply.
    out = out + center_ref[...].astype(jnp.float32)         # (1, F) broadcasts
    o_ref[...] = out.astype(o_ref.dtype)


def _round_up(v, m):
    return (v + m - 1) // m * m


def _choose_tile_rows(rows, feat, itemsize, *, vmem_budget_bytes=24 << 20, max_tile=1024):
    """Pick a row tile: big (streaming kernel), VMEM-safe, >=2 grid steps when possible."""
    bytes_per_row = feat * max(int(itemsize), 4)
    # Double-buffered input + output tiles ~= 4 * tile_rows * feat * itemsize.
    cap_by_vmem = max(8, vmem_budget_bytes // (4 * bytes_per_row))
    # Keep at least 2 grid steps (v7x megacore) whenever rows span >1 sublane tile.
    cap_by_split = _round_up(pl.cdiv(rows, 2), 8) if rows > 8 else 8
    tile = min(max_tile, cap_by_vmem, cap_by_split, _round_up(rows, 8))
    tile = max(8, (tile // 8) * 8)                          # sublane-aligned
    return int(tile)


def layer_norm(x, center_param, *, tile_rows=None):
    """x: (rows, features); center_param: (features,)."""
    rows, feat = x.shape
    if tile_rows is None:
        tile_rows = _choose_tile_rows(rows, feat, x.dtype.itemsize)
    center_2d = center_param.reshape(1, feat)

    grid = (pl.cdiv(rows, tile_rows),)
    return pl.pallas_call(
        _layernorm_kernel,
        out_shape=jax.ShapeDtypeStruct((rows, feat), x.dtype),
        grid_spec=pltpu.PrefetchScalarGridSpec(
            num_scalar_prefetch=0,
            grid=grid,
            in_specs=[
                pl.BlockSpec((tile_rows, feat), lambda i: (i, 0)),
                pl.BlockSpec((1, feat), lambda i: (0, 0)),
            ],
            out_specs=pl.BlockSpec((tile_rows, feat), lambda i: (i, 0)),
        ),
        compiler_params=pltpu.CompilerParams(
            dimension_semantics=("parallel",),
            vmem_limit_bytes=64 << 20,
        ),
    )(x, center_2d)


def layer_norm_ref(x, center_param):
    mean = jnp.mean(x, axis=-1, keepdims=True)
    std = jnp.sqrt(jnp.sum((x - mean) ** 2, axis=-1, keepdims=True) / (x.shape[-1] - 1))
    out = (x - mean) / (std + EPS)
    return out + center_param


if __name__ == "__main__":
    key = jax.random.PRNGKey(0)
    rows, features = 16, 128

    x = jax.random.normal(key, (rows, features), dtype=jnp.float32)
    # Deterministic parameter init, matching nn.Parameter(torch.zeros(features)).
    center_param = jnp.zeros((features,), dtype=jnp.float32)
    # (scale=False in the default ctor, so no scale_param is created.)

    out = layer_norm(x, center_param)
    out = jax.block_until_ready(out)

    ref = layer_norm_ref(x, center_param)
    assert out.shape == (rows, features)
    assert jnp.allclose(out, ref, atol=1e-5, rtol=1e-5), "mismatch vs reference"

    print("KERNEL_OK")
</pallas_src>

<mosaic_0001>
module attributes {stable_mosaic.version = 11 : i64} {
  func.func @_layernorm_kernel(%arg0: i32, %arg1: memref<8x128xf32, #tpu.memory_space<vmem>>, %arg2: memref<1x128xf32, #tpu.memory_space<vmem>>, %arg3: memref<8x128xf32, #tpu.memory_space<vmem>>) attributes {dimension_semantics = [#tpu.dimension_semantics<parallel>], iteration_bounds = array<i64: 2>, scalar_prefetch = 0 : i64, scratch_operands = 0 : i64, tpu.core_type = #tpu.core_type<tc>, window_params = [{transform_indices = @transform_0, window_bounds = array<i64: 8, 128>}, {pipeline_mode = #tpu.pipeline_mode<synchronous>, transform_indices = @transform_1, window_bounds = array<i64: 1, 128>}, {transform_indices = @transform_2, window_bounds = array<i64: 8, 128>}]} {
    %c0 = arith.constant 0 : index
    %c0_0 = arith.constant 0 : index
    %0 = vector.load %arg1[%c0, %c0_0] : memref<8x128xf32, #tpu.memory_space<vmem>>, vector<8x128xf32>
    %cst = arith.constant dense<0.000000e+00> : vector<8xf32>
    %1 = vector.multi_reduction <add>, %0, %cst [1] : vector<8x128xf32> to vector<8xf32>
    %2 = vector.shape_cast %1 : vector<8xf32> to vector<8x1xf32>
    %3 = arith.mulf %0, %0 : vector<8x128xf32>
    %cst_1 = arith.constant dense<0.000000e+00> : vector<8xf32>
    %4 = vector.multi_reduction <add>, %3, %cst_1 [1] : vector<8x128xf32> to vector<8xf32>
    %5 = vector.shape_cast %4 : vector<8xf32> to vector<8x1xf32>
    %cst_2 = arith.constant 7.812500e-03 : f32
    %6 = vector.broadcast %cst_2 : f32 to vector<8x1xf32>
    %7 = arith.mulf %2, %6 : vector<8x1xf32>
    %cst_3 = arith.constant 1.280000e+02 : f32
    %8 = vector.broadcast %cst_3 : f32 to vector<8x1xf32>
    %9 = arith.mulf %8, %7 : vector<8x1xf32>
    %10 = arith.mulf %9, %7 : vector<8x1xf32>
    %11 = arith.subf %5, %10 : vector<8x1xf32>
    %cst_4 = arith.constant 0.00787401571 : f32
    %12 = vector.broadcast %cst_4 : f32 to vector<8x1xf32>
    %13 = arith.mulf %11, %12 : vector<8x1xf32>
    %cst_5 = arith.constant 0.000000e+00 : f32
    %14 = vector.broadcast %cst_5 : f32 to vector<8x1xf32>
    %15 = arith.maximumf %13, %14 : vector<8x1xf32>
    %16 = math.sqrt %15 : vector<8x1xf32>
    %cst_6 = arith.constant 9.99999997E-7 : f32
    %17 = vector.broadcast %cst_6 : f32 to vector<8x1xf32>
    %18 = arith.addf %16, %17 : vector<8x1xf32>
    %19 = tpu.reciprocal %18 : vector<8x1xf32> -> vector<8x1xf32>
    %20 = vector.broadcast %7 : vector<8x1xf32> to vector<8x128xf32>
    %21 = arith.subf %0, %20 : vector<8x128xf32>
    %22 = vector.broadcast %19 : vector<8x1xf32> to vector<8x128xf32>
    %23 = arith.mulf %21, %22 : vector<8x128xf32>
    %c0_7 = arith.constant 0 : index
    %c0_8 = arith.constant 0 : index
    %24 = vector.load %arg2[%c0_7, %c0_8] : memref<1x128xf32, #tpu.memory_space<vmem>>, vector<1x128xf32>
    %25 = vector.broadcast %24 : vector<1x128xf32> to vector<8x128xf32>
    %26 = arith.addf %23, %25 : vector<8x128xf32>
    %c0_9 = arith.constant 0 : index
    %c0_10 = arith.constant 0 : index
    %27 = vector.load %arg3[%c0_9, %c0_10] : memref<8x128xf32, #tpu.memory_space<vmem>>, vector<8x128xf32>
    tpu.vector_store %arg3[%c0_9, %c0_10], %26 {strides = array<i32>} : memref<8x128xf32, #tpu.memory_space<vmem>>, vector<8x128xf32>,
    return
  }
  func.func @transform_0(%arg0: i32) -> (i32, i32) {
    %c0_i32 = arith.constant 0 : i32
    %c0_i32_0 = arith.constant 0 : i32
    return %arg0, %c0_i32 : i32, i32
  }
  func.func @transform_1(%arg0: i32) -> (i32, i32) {
    %c0_i32 = arith.constant 0 : i32
    %c0_i32_0 = arith.constant 0 : i32
    %c0_i32_1 = arith.constant 0 : i32
    return %c0_i32, %c0_i32_0 : i32, i32
  }
  func.func @transform_2(%arg0: i32) -> (i32, i32) {
    %c0_i32 = arith.constant 0 : i32
    %c0_i32_0 = arith.constant 0 : i32
    return %arg0, %c0_i32 : i32, i32
  }
}

</mosaic_0001>

<llo_original>
// kernel: tpu_custom_call.1
$region0: #{tpu_custom_call.1}
  #allocation0 [shape = 'u32[]', space=smem, size = 0x4, offset = 0x4, fixed_abs, tag = 'smem constant byte address 0x4 - core index']
  #allocation1 [shape = 'u32[144,128]{1,0:T(1,128)}', space=vmem, size = 0x12000, scoped, tag = 'internal scratch']
  %s0 = inlined_call_operand.hbm [shape: f32[16,128], index: 0, kind: input, shape index: {}]
  %s1 = inlined_call_operand.hbm [shape: f32[1,128], index: 1, kind: input, shape index: {}]
  %s2 = inlined_call_operand.hbm [shape: f32[16,128], index: 2, kind: output, shape index: {}]
  %s3 = sld [smem:[#allocation0]]
  $region49: #{tpu_custom_call.1} parent=0
    _
  %s5 = ssub.s32 1, %s3
  %s6 = scalar_select 0, %s5, %s3
  $region1: #{tpu_custom_call.1} parent=0
    #allocation2 [shape = 'u8[8192]{0}', space=vmem, size = 0x2000, scoped, tag = 'input window, operand 0']
    #allocation3 [shape = 's32[2]{0}', space=sflag, size = 0x8, scoped, tag = 'scoped memory for tpu_custom_call.1']
    #allocation4 [shape = 's32[2]{0}', space=sflag, size = 0x8, scoped, tag = 'scoped memory for tpu_custom_call.1']
    #allocation5 [shape = 'u8[512]{0}', space=vmem, size = 0x400, scoped, tag = 'input window, operand 1, single buffered']
    #allocation6 [shape = 's32[1]{0}', space=sflag, size = 0x4, scoped, tag = 'scoped memory for tpu_custom_call.1']
    #allocation7 [shape = 'u8[8192]{0}', space=vmem, size = 0x2000, scoped, tag = 'output window, operand 0']
    %7 = vsyncpa [#allocation3], 0
    %s8 = scalar_lea.sflag [#allocation3], 1
    %9 = vsyncpa %s8, 0
    %10 = vsyncpa [#allocation6], 0
    %11 = vsyncpa [#allocation4], 0
    %s12 = scalar_lea.sflag [#allocation4], 1
    %13 = vsyncpa %s12, 0
    loop: start=0, step=1, limit=4
    $region2: #{tpu_custom_call.1} parent=1 // loop_pre_header
      _
    $region3: #{tpu_custom_call.1} parent=1 // loop_header
      %s15 = sphi 0, %s19
      %p16 = scmp.ge.s32.totalorder %s15, 4
      %s25 = sphi 0, %s27
      %s28 = sphi 0, %s25
      %s29 = sphi 0, %s28
      %s45 = sphi 0, %s29
      %s49 = sphi 0, %s49
      %s51 = sphi 0, %s49
      %s52 = sphi 0, %s51
      %s66 = sphi 0, %s52
      %s72 = sphi 0, %s74
      %s75 = sphi 0, %s72
      %s76 = sphi 0, %s75
      %s92 = sphi 0, %s76
    $region4: #{tpu_custom_call.1} parent=1 // loop_header_branch
      %18 = sbr.rel (%p16) target = $region8
    $region5: #{tpu_custom_call.1} parent=1 // loop_body
      %s20 = ssub.s32 %s15, 1
      %s21 = ssub.s32 %s15, 2
      %s22 = sadd.s32 %s15, 1
      %s23 = ssub.s32 %s15, %s22
      %p24 = scmp.eq.s32.totalorder %s23, 0
      %s26 = sadd.s32 %s25, 1
      %s27 = scalar_select %p24, %s25, %s26
      %p30 = pneg %p24
      %p31 = scmp.eq.s32.totalorder %s15, 1
      %p32 = por %p30, %p31
      %p33 = scmp.ne.s32.totalorder %s25, %s28
      %p34 = scmp.eq.s32.totalorder %s15, 0
      %p35 = por %p33, %p34
      %p36 = scmp.ne.s32.totalorder %s25, %s28
      %p37 = scmp.eq.s32.totalorder %s20, 1
      %p38 = por %p36, %p37
      %p39 = scmp.ne.s32.totalorder %s28, %s29
      %p40 = scmp.eq.s32.totalorder %s20, 0
      %p41 = por %p39, %p40
      %p42 = scmp.ne.s32.totalorder %s28, %s29
      %p43 = scmp.eq.s32.totalorder %s21, 1
      %p44 = por %p42, %p43
      %p46 = scmp.ne.s32.totalorder %s29, %s45
      %p47 = scmp.eq.s32.totalorder %s21, 0
      %p48 = por %p46, %p47
      %s50 = sadd.s32 %s49, 1
      %p53 = scmp.eq.s32.totalorder %s15, 1
      %p54 = scmp.ne.s32.totalorder %s49, %s51
      %p55 = scmp.eq.s32.totalorder %s15, 0
      %p56 = por %p54, %p55
      %p57 = scmp.ne.s32.totalorder %s49, %s51
      %p58 = scmp.eq.s32.totalorder %s20, 1
      %p59 = por %p57, %p58
      %p60 = scmp.ne.s32.totalorder %s51, %s52
      %p61 = scmp.eq.s32.totalorder %s20, 0
      %p62 = por %p60, %p61
      %p63 = scmp.ne.s32.totalorder %s51, %s52
      %p64 = scmp.eq.s32.totalorder %s21, 1
      %p65 = por %p63, %p64
      %p67 = scmp.ne.s32.totalorder %s52, %s66
      %p68 = scmp.eq.s32.totalorder %s21, 0
      %p69 = por %p67, %p68
      %s70 = ssub.s32 %s15, %s22
      %p71 = scmp.eq.s32.totalorder %s70, 0
      %s73 = sadd.s32 %s72, 1
      %s74 = scalar_select %p71, %s72, %s73
      %p77 = pneg %p71
      %p78 = scmp.eq.s32.totalorder %s15, 1
      %p79 = por %p77, %p78
      %p80 = scmp.ne.s32.totalorder %s72, %s75
      %p81 = scmp.eq.s32.totalorder %s15, 0
      %p82 = por %p80, %p81
      %p83 = scmp.ne.s32.totalorder %s72, %s75
      %p84 = scmp.eq.s32.totalorder %s20, 1
      %p85 = por %p83, %p84
      %p86 = scmp.ne.s32.totalorder %s75, %s76
      %p87 = scmp.eq.s32.totalorder %s20, 0
      %p88 = por %p86, %p87
      %p89 = scmp.ne.s32.totalorder %s75, %s76
      %p90 = scmp.eq.s32.totalorder %s21, 1
      %p91 = por %p89, %p90
      %p93 = scmp.ne.s32.totalorder %s76, %s92
      %p94 = scmp.eq.s32.totalorder %s21, 0
      %p95 = por %p93, %p94
      %p96 = scmp.le.s32.totalorder 1, %s15
      %p97 = scmp.lt.s32.totalorder %s15, 3
      %p98 = pnand %p96, %p97
      %p99 = pneg %p98
      // Predicated region
      $region9: #{tpu_custom_call.1} parent=5 // pred_check
        _
      $region10: #{tpu_custom_call.1} parent=5 // pred_check_branch
        %101 = sbr.rel (%p98) target = $region12
      $region11: #{tpu_custom_call.1} parent=5 // pred_region
        %s102 = ssub.s32 %s15, 1
        // Predicated region
        $region13: #{tpu_custom_call.1} parent=11 // pred_check
          %p103 = pneg %p62
        $region14: #{tpu_custom_call.1} parent=11 // pred_check_branch
          %105 = sbr.rel (%p103) target = $region16
        $region15: #{tpu_custom_call.1} parent=11 // pred_region
          %s107 = ssub.s32 16, 16
          %108 = vsyncadd [#allocation6], %s107
          %s110 = sshll.u32 [#allocation5], 4
          %s111 = int_to_ptr.vmem [resolvable:$true] %s110
          %113 = dma.hbm_to_vmem [thread:$0]  %s1, 16, %s111, [#allocation6]
        $region16: #{tpu_custom_call.1} parent=11 // pred_fallthru
          _
      $region12: #{tpu_custom_call.1} parent=5 // pred_fallthru
        _
      %p114 = scmp.lt.s32.totalorder %s15, 2
      // Predicated region
      $region17: #{tpu_custom_call.1} parent=5 // pred_check
        %p115 = pneg %p114
      $region18: #{tpu_custom_call.1} parent=5 // pred_check_branch
        %117 = sbr.rel (%p115) target = $region20
      $region19: #{tpu_custom_call.1} parent=5 // pred_region
        // Predicated region
        $region21: #{tpu_custom_call.1} parent=19 // pred_check
          %p118 = pneg %p35
        $region22: #{tpu_custom_call.1} parent=19 // pred_check_branch
          %120 = sbr.rel (%p118) target = $region24
        $region23: #{tpu_custom_call.1} parent=19 // pred_region
          %s121 = sand.u32 %s25, 1
          %s122 = scalar_lea.sflag [#allocation3], %s121
          %s123 = sand.u32 %s25, 1
          %s124 = smul.addr %s123, 8
          %s125 = scalar_lea.vmem [#allocation2], %s124
          %s127 = ssub.s32 128, 128
          %128 = vsyncadd %s122, %s127
          %s129 = smul.addr %s15, 128
          %s130 = scalar_lea.hbm %s0, %s129
          %s132 = sshll.u32 %s125, 4
          %s133 = int_to_ptr.vmem [resolvable:$true] %s132
          %135 = dma.hbm_to_vmem [thread:$0]  %s130, 128, %s133, %s122
        $region24: #{tpu_custom_call.1} parent=19 // pred_fallthru
          _
      $region20: #{tpu_custom_call.1} parent=5 // pred_fallthru
        _
      %p136 = scmp.le.s32.totalorder 1, %s15
      %p137 = scmp.lt.s32.totalorder %s15, 3
      %p138 = pnand %p136, %p137
      %p139 = pneg %p138
      // Predicated region
      $region25: #{tpu_custom_call.1} parent=5 // pred_check
        _
      $region26: #{tpu_custom_call.1} parent=5 // pred_check_branch
        %141 = sbr.rel (%p138) target = $region28
      $region27: #{tpu_custom_call.1} parent=5 // pred_region
        %s142 = ssub.s32 %s15, 1
        %s143 = sand.u32 %s28, 1
        %s144 = scalar_lea.sflag [#allocation3], %s143
        %s145 = sand.u32 %s28, 1
        %s146 = smul.addr %s145, 8
        %s147 = scalar_lea.vmem [#allocation2], %s146
        // Predicated region
        $region29: #{tpu_custom_call.1} parent=27 // pred_check
          %p148 = pneg %p41
        $region30: #{tpu_custom_call.1} parent=27 // pred_check_branch
          %150 = sbr.rel (%p148) target = $region32
        $region31: #{tpu_custom_call.1} parent=27 // pred_region
          %151 = dma.done %s144, 128
        $region32: #{tpu_custom_call.1} parent=27 // pred_fallthru
          _
        // Predicated region
        $region33: #{tpu_custom_call.1} parent=27 // pred_check
          %p152 = pneg %p62
        $region34: #{tpu_custom_call.1} parent=27 // pred_check_branch
          %154 = sbr.rel (%p152) target = $region36
        $region35: #{tpu_custom_call.1} parent=27 // pred_region
          %155 = dma.done [#allocation6], 16
        $region36: #{tpu_custom_call.1} parent=27 // pred_fallthru
          _
        %s156 = sand.u32 %s28, 1
        %s157 = scalar_lea.sflag [#allocation3], %s156
        %s158 = sand.u32 %s28, 1
        %s159 = smul.addr %s158, 8
        %s160 = scalar_lea.vmem [#allocation2], %s159
        %p161 = pneg %p41
        %p162 = pneg %p38
        %p163 = pneg %p62
        %p164 = pneg %p59
        %p165 = pneg %p88
        %p166 = pneg %p85
        %s167 = sand.u32 %s75, 1
        %s168 = scalar_lea.sflag [#allocation4], %s167
        %s169 = sand.u32 %s75, 1
        %s170 = smul.addr %s169, 8
        %s171 = scalar_lea.vmem [#allocation7], %s170
        %v172 = vld [vmem:[%s147] sm:$0xff]
        %173 = vadd.xlane.f32.xlu0 %v172
        %v174 = vpop.xlane.xlu0 %173
        %v175 = vmul.f32 %v172, %v172
        %176 = vadd.xlane.f32.xlu0 %v175
        %v177 = vpop.xlane.xlu0 %176
        %v178 = vmul.f32 %v174, 0.0078125
        %v179 = vmul.f32 %v178, 128.0
        %v180 = vmul.f32 %v179, %v178
        %v181 = vsub.f32 %v177, %v180
        %v182 = vmul.f32 %v181, 0.007874016
        %v183 = vmax.f32 %v182, 0.0
        %v184 = vrsqrt.pop %v183
        %v185 = vmul.f32 %v183, %v184
        %vm186 = vcmp.eq.f32.partialorder %v183, inf
        %v187 = vsel %vm186, %v183, %v185
        %vm188 = vcmp.eq.f32.partialorder %v183, 0.0
        %v189 = vand.u32 %v183, 2147483648
        %v190 = vsel %vm188, %v189, %v187
        %v191 = vadd.f32 %v190, 1e-06
        %v192 = vrcp.pop %v191
        %v193 = vsub.f32 %v172, %v178
        %v194 = vmul.f32 %v193, %v192
        %v195 = vld [vmem:[#allocation5] sm:$0x1]
        %v197 = vlaneseq
        %v198 = vshrl.u32 %v197, 7
        %v199 = vsub.s32 0, %v198
        %v200 = vrot.slane %v195, %v199
        %v202 = vadd.f32 %v194, %v200
        %203 = vst [vmem:[%s171] sm:$0xff] %v202
        %s204 = sand.u32 %s75, 1
        %s205 = scalar_lea.sflag [#allocation4], %s204
        %s206 = sand.u32 %s75, 1
        %s207 = smul.addr %s206, 8
        %s208 = scalar_lea.vmem [#allocation7], %s207
        // Predicated region
        $region37: #{tpu_custom_call.1} parent=27 // pred_check
          %p209 = pneg %p85
        $region38: #{tpu_custom_call.1} parent=27 // pred_check_branch
          %211 = sbr.rel (%p209) target = $region40
        $region39: #{tpu_custom_call.1} parent=27 // pred_region
          %s213 = ssub.s32 128, 128
          %214 = vsyncadd %s205, %s213
          %s215 = smul.addr %s20, 128
          %s216 = scalar_lea.hbm %s2, %s215
          %s218 = sshll.u32 %s208, 4
          %s219 = int_to_ptr.vmem [resolvable:$true] %s218
          %221 = dma.vmem_to_hbm [thread:$0]  %s219, 128, %s216, %s205
        $region40: #{tpu_custom_call.1} parent=27 // pred_fallthru
          _
      $region28: #{tpu_custom_call.1} parent=5 // pred_fallthru
        _
      %p222 = scmp.le.s32.totalorder 2, %s15
      // Predicated region
      $region41: #{tpu_custom_call.1} parent=5 // pred_check
        %p223 = pneg %p222
      $region42: #{tpu_custom_call.1} parent=5 // pred_check_branch
        %225 = sbr.rel (%p223) target = $region44
      $region43: #{tpu_custom_call.1} parent=5 // pred_region
        %s226 = ssub.s32 %s15, 2
        // Predicated region
        $region45: #{tpu_custom_call.1} parent=43 // pred_check
          %p227 = pneg %p91
        $region46: #{tpu_custom_call.1} parent=43 // pred_check_branch
          %229 = sbr.rel (%p227) target = $region48
        $region47: #{tpu_custom_call.1} parent=43 // pred_region
          %s230 = sand.u32 %s76, 1
          %s231 = scalar_lea.sflag [#allocation4], %s230
          %s232 = sand.u32 %s76, 1
          %s233 = smul.addr %s232, 8
          %s234 = scalar_lea.vmem [#allocation7], %s233
          %235 = dma.done %s231, 128
        $region48: #{tpu_custom_call.1} parent=43 // pred_fallthru
          _
      $region44: #{tpu_custom_call.1} parent=5 // pred_fallthru
        _
    $region6: #{tpu_custom_call.1} parent=1 // loop_footer
      %s19 = sadd.s32 1, %s15
    $region7: #{tpu_custom_call.1} parent=1 // loop_footer_branch
      %14 = sbr.rel target = $region3
    $region8: #{tpu_custom_call.1} parent=1 // loop_exit
      _
    %236 = vsyncpa [#allocation3], 1
    %s237 = scalar_lea.sflag [#allocation3], 1
    %238 = vsyncpa %s237, 1
    %239 = vsyncpa [#allocation6], 1
    %240 = vsyncpa [#allocation4], 1
    %s241 = scalar_lea.sflag [#allocation4], 1
    %242 = vsyncpa %s241, 1

</llo_original>
